<compile_context>
chip_gen: v7x
topology: tpu7x:2x2x1
jax: 0.10.0
libtpu: 0.0.40
codegen_flags: <defaults>
</compile_context>

<pallas_src>
import functools

import jax
import jax.numpy as jnp
from jax import lax
from jax.experimental import pallas as pl
from jax.experimental.pallas import tpu as pltpu

LANE = 128


# ----------------------------- Pallas kernel --------------------------------
def _algorithm_kernel(pos_ref, obs_ref, logd_ref, wpt_ref, wgt_ref, bg_ref,
                      out_ref, *, inv_scale):
    pos = pos_ref[...]                    # (B, HW)  Position maps / scale (lane-dense)
    obs = obs_ref[...]                    # (C, HW)  Obstacle maps          (lane-dense)

    # ---- barrier_check_pos as a single MXU contraction over HW --------------
    # relu(obs*pos - pos*pos).sum(H,W) == pos @ relu(obs - 1/scale).T
    # exactly, since pos only takes values {0, 1/scale} (binary rasterizer).
    robs = jnp.maximum(obs - inv_scale, 0.0)                        # (C, HW)
    bvec = lax.dot_general(pos, robs, (((1,), (1,)), ((), ())),
                           preferred_element_type=jnp.float32)      # (B, C)

    # ---- params_model: Linear(2 -> K, bias=False) on the VPU ----------------
    logd = logd_ref[...]                  # (B, 2)
    wpt = wpt_ref[...]                    # (2, K)  pre-transposed weight
    pout = logd[:, 0:1] * wpt[0:1, :] + logd[:, 1:2] * wpt[1:2, :]  # (B, K)

    # ---- weightGen_ob: Linear(C -> K) + softmax on the VPU -------------------
    # TODO(synk): weightGen_ob's real architecture is not given; a deterministic
    # linear+softmax head is used as a stand-in.
    wgt = wgt_ref[...]                    # (C, K)  pre-transposed weight
    bg = bg_ref[...]                      # (1, K)
    C = wgt.shape[0]
    logits = bvec[:, 0:1] * wgt[0:1, :]
    for c in range(1, C):                 # C is small & static -> unrolled VPU FMAs
        logits = logits + bvec[:, c:c + 1] * wgt[c:c + 1, :]
    logits = logits + bg                  # (B, K)

    m = jnp.max(logits, axis=-1, keepdims=True)
    e = jnp.exp(logits - m)
    denom = jnp.sum(e, axis=-1, keepdims=True)
    obsw = e * pl.reciprocal(denom, approx=True)                    # (B, K)

    # ---- out = (param_output * obs_weight).sum(-1) ---------------------------
    out = jnp.sum(pout * obsw, axis=-1, keepdims=True)              # (B, 1)

    # ---- pack everything into one lane-dense (B, 128) slab -------------------
    K = pout.shape[-1]
    out_ref[...] = jnp.zeros_like(out_ref)
    out_ref[:, 0:1] = out
    out_ref[:, 1:1 + K] = obsw
    out_ref[:, 1 + K:1 + 2 * K] = pout


def run_algorithm_pallas(pos_flat, obs_flat, log_dist, wp, wg, bg, scale):
    B, HW = pos_flat.shape
    C = obs_flat.shape[0]
    K = wp.shape[0]       # opt.map_order + 1

    kernel = functools.partial(_algorithm_kernel, inv_scale=1.0 / float(scale))

    # NOTE: for real batch / map sizes, add a 'parallel' grid axis over B
    # (megacore on v7x) and tile HW with a trailing 'arbitrary' reduction axis
    # + a (B, C) VMEM accumulator.  At B=2, C=4, HW=256 one program is right.
    slab = pl.pallas_call(
        kernel,
        grid=(1,),
        in_specs=[
            pl.BlockSpec((B, HW), lambda i: (0, 0)),
            pl.BlockSpec((C, HW), lambda i: (0, 0)),
            pl.BlockSpec((B, 2), lambda i: (0, 0)),
            pl.BlockSpec((2, K), lambda i: (0, 0)),
            pl.BlockSpec((C, K), lambda i: (0, 0)),
            pl.BlockSpec((1, K), lambda i: (0, 0)),
        ],
        out_specs=pl.BlockSpec((B, LANE), lambda i: (0, 0)),
        out_shape=jax.ShapeDtypeStruct((B, LANE), jnp.float32),
        compiler_params=pltpu.CompilerParams(
            dimension_semantics=("arbitrary",)),
    )(pos_flat, obs_flat, log_dist, wp.T, wg.T, bg)

    out = slab[:, 0]
    obs_weight = slab[:, 1:1 + K]
    param_output = slab[:, 1 + K:1 + 2 * K]
    return out, obs_weight, param_output


# ------------------------------ JAX glue -------------------------------------
def compute_log_dist(x):
    # TODO(synk): dist.distance not provided; use [log10(euclid dist), 1.0].
    d = jnp.sqrt((x[:, 0] - x[:, 2]) ** 2 + (x[:, 1] - x[:, 3]) ** 2) + 1e-6
    return jnp.stack([jnp.log10(d), jnp.ones_like(d)], axis=-1)     # (B, 2)


def locs_to_map(x, H, W, n_samples=32):
    # TODO(synk): Map.locs_to_map not provided; rasterize the Tx-Rx segment.
    # Scatter-free: one-hot iota compares + a batched matmul (no XLA scatter).
    t = jnp.linspace(0.0, 1.0, n_samples)
    xs = x[:, 0:1] + t[None, :] * (x[:, 2:3] - x[:, 0:1])           # (B, n)
    ys = x[:, 1:2] + t[None, :] * (x[:, 3:4] - x[:, 1:2])           # (B, n)
    xi = jnp.clip(jnp.round(xs), 0.0, W - 1.0)                      # (B, n)
    yi = jnp.clip(jnp.round(ys), 0.0, H - 1.0)                      # (B, n)
    row = jnp.arange(H, dtype=jnp.float32)
    col = jnp.arange(W, dtype=jnp.float32)
    oh_y = (yi[:, :, None] == row[None, None, :]).astype(jnp.float32)   # (B,n,H)
    oh_x = (xi[:, :, None] == col[None, None, :]).astype(jnp.float32)   # (B,n,W)
    hits = jnp.einsum('bnh,bnw->bhw', oh_y, oh_x)                   # sample counts
    return jnp.minimum(hits, 1.0)                                   # binary (B,H,W)


def linear_re_net(mapseed, w_map, C, H, W):
    # TODO(synk): Linear_RE_Net.map_generate not provided; linear + relu stand-in.
    flat = jax.nn.relu(mapseed @ w_map)                              # (1, C*H*W)
    return flat.reshape(C, H, W)


def algorithm_forward(x, mapseed, params, H, W, scale=50.0):
    B = x.shape[0]
    C = params["C"]
    log_dist = compute_log_dist(x)                                   # (B, 2)
    pos_maps = locs_to_map(x, H, W) / scale                          # (B,H,W) in {0, 1/scale}
    obstacle_maps = linear_re_net(mapseed, params["w_map"], C, H, W) # (C,H,W)
    out, obs_weight, param_output = run_algorithm_pallas(
        pos_maps.reshape(B, H * W),                                  # lane-dense
        obstacle_maps.reshape(C, H * W),                             # lane-dense
        log_dist, params["wp"], params["wg"], params["bg"], scale)
    return out, obs_weight, obstacle_maps, param_output


# ------------------------------- main ----------------------------------------
if __name__ == "__main__":
    key = jax.random.PRNGKey(0)
    k_x, k_seed, k_map, k_wg, k_bg = jax.random.split(key, 5)

    B, C, H, W = 2, 4, 16, 16
    S = 8          # mapseed feature size
    K = 3          # opt.map_order + 1

    # Inputs
    x = jax.random.uniform(k_x, (B, 4), minval=0.0, maxval=float(H - 1))
    mapseed = jax.random.uniform(k_seed, (1, S))

    # Deterministic parameters
    params = {
        # params_model.weight exactly as set in Algorithm.__init__
        "wp": jnp.array([[-22.0, -27.0], [-28.0, -24.0], [-36.0, -23.0]],
                        dtype=jnp.float32),
        "w_map": 0.1 * jax.random.normal(k_map, (S, C * H * W), jnp.float32),
        "wg": 0.1 * jax.random.normal(k_wg, (K, C), jnp.float32),
        "bg": 0.1 * jax.random.normal(k_bg, (1, K), jnp.float32),
        "C": C,
    }

    out, obs_weight, obstacle_maps, param_output = algorithm_forward(
        x, mapseed, params, H, W, scale=50.0)

    jax.block_until_ready((out, obs_weight, obstacle_maps, param_output))
    assert out.shape == (B,)
    assert obs_weight.shape == (B, K)
    assert obstacle_maps.shape == (C, H, W)
    assert param_output.shape == (B, K)
    print("KERNEL_OK")
</pallas_src>

<mosaic_0001>
module attributes {stable_mosaic.version = 11 : i64} {
  func.func @_algorithm_kernel(%arg0: i32, %arg1: memref<2x256xf32, #tpu.memory_space<vmem>>, %arg2: memref<4x256xf32, #tpu.memory_space<vmem>>, %arg3: memref<2x2xf32, #tpu.memory_space<vmem>>, %arg4: memref<2x3xf32, #tpu.memory_space<vmem>>, %arg5: memref<4x3xf32, #tpu.memory_space<vmem>>, %arg6: memref<1x3xf32, #tpu.memory_space<vmem>>, %arg7: memref<2x128xf32, #tpu.memory_space<vmem>>) attributes {dimension_semantics = [#tpu.dimension_semantics<arbitrary>], iteration_bounds = array<i64: 1>, scalar_prefetch = 0 : i64, scratch_operands = 0 : i64, tpu.core_type = #tpu.core_type<tc>, window_params = [{pipeline_mode = #tpu.pipeline_mode<synchronous>, transform_indices = @transform_0, window_bounds = array<i64: 2, 256>}, {pipeline_mode = #tpu.pipeline_mode<synchronous>, transform_indices = @transform_1, window_bounds = array<i64: 4, 256>}, {pipeline_mode = #tpu.pipeline_mode<synchronous>, transform_indices = @transform_2, window_bounds = array<i64: 2, 2>}, {pipeline_mode = #tpu.pipeline_mode<synchronous>, transform_indices = @transform_3, window_bounds = array<i64: 2, 3>}, {pipeline_mode = #tpu.pipeline_mode<synchronous>, transform_indices = @transform_4, window_bounds = array<i64: 4, 3>}, {pipeline_mode = #tpu.pipeline_mode<synchronous>, transform_indices = @transform_5, window_bounds = array<i64: 1, 3>}, {pipeline_mode = #tpu.pipeline_mode<synchronous>, transform_indices = @transform_6, window_bounds = array<i64: 2, 128>}]} {
    %c0 = arith.constant 0 : index
    %c0_0 = arith.constant 0 : index
    %0 = vector.load %arg1[%c0, %c0_0] : memref<2x256xf32, #tpu.memory_space<vmem>>, vector<2x256xf32>
    %c0_1 = arith.constant 0 : index
    %c0_2 = arith.constant 0 : index
    %1 = vector.load %arg2[%c0_1, %c0_2] : memref<4x256xf32, #tpu.memory_space<vmem>>, vector<4x256xf32>
    %cst = arith.constant 2.000000e-02 : f32
    %2 = vector.broadcast %cst : f32 to vector<4x256xf32>
    %3 = arith.subf %1, %2 : vector<4x256xf32>
    %cst_3 = arith.constant 0.000000e+00 : f32
    %4 = vector.broadcast %cst_3 : f32 to vector<4x256xf32>
    %5 = arith.maximumf %3, %4 : vector<4x256xf32>
    %cst_4 = arith.constant dense<0.000000e+00> : vector<2x4xf32>
    %6 = tpu.matmul %0, %5, %cst_4 {dimension_numbers = #tpu.dot_dimension_numbers<[1], [1], [0], [0], [0, 0, 1, 0], [], []>} : vector<2x256xf32>, vector<4x256xf32>, vector<2x4xf32> -> vector<2x4xf32>
    %c0_5 = arith.constant 0 : index
    %c0_6 = arith.constant 0 : index
    %7 = vector.load %arg3[%c0_5, %c0_6] : memref<2x2xf32, #tpu.memory_space<vmem>>, vector<2x2xf32>
    %c0_7 = arith.constant 0 : index
    %c0_8 = arith.constant 0 : index
    %8 = vector.load %arg4[%c0_7, %c0_8] : memref<2x3xf32, #tpu.memory_space<vmem>>, vector<2x3xf32>
    %9 = vector.extract_strided_slice %7 {offsets = [0, 0], sizes = [2, 1], strides = [1, 1]} : vector<2x2xf32> to vector<2x1xf32>
    %10 = vector.extract_strided_slice %8 {offsets = [0, 0], sizes = [1, 3], strides = [1, 1]} : vector<2x3xf32> to vector<1x3xf32>
    %11 = vector.broadcast %9 : vector<2x1xf32> to vector<2x3xf32>
    %12 = vector.broadcast %10 : vector<1x3xf32> to vector<2x3xf32>
    %13 = arith.mulf %11, %12 : vector<2x3xf32>
    %14 = vector.extract_strided_slice %7 {offsets = [0, 1], sizes = [2, 1], strides = [1, 1]} : vector<2x2xf32> to vector<2x1xf32>
    %15 = vector.extract_strided_slice %8 {offsets = [1, 0], sizes = [1, 3], strides = [1, 1]} : vector<2x3xf32> to vector<1x3xf32>
    %16 = vector.broadcast %14 : vector<2x1xf32> to vector<2x3xf32>
    %17 = vector.broadcast %15 : vector<1x3xf32> to vector<2x3xf32>
    %18 = arith.mulf %16, %17 : vector<2x3xf32>
    %19 = arith.addf %13, %18 : vector<2x3xf32>
    %c0_9 = arith.constant 0 : index
    %c0_10 = arith.constant 0 : index
    %20 = vector.load %arg5[%c0_9, %c0_10] : memref<4x3xf32, #tpu.memory_space<vmem>>, vector<4x3xf32>
    %c0_11 = arith.constant 0 : index
    %c0_12 = arith.constant 0 : index
    %21 = vector.load %arg6[%c0_11, %c0_12] : memref<1x3xf32, #tpu.memory_space<vmem>>, vector<1x3xf32>
    %22 = vector.extract_strided_slice %6 {offsets = [0, 0], sizes = [2, 1], strides = [1, 1]} : vector<2x4xf32> to vector<2x1xf32>
    %23 = vector.extract_strided_slice %20 {offsets = [0, 0], sizes = [1, 3], strides = [1, 1]} : vector<4x3xf32> to vector<1x3xf32>
    %24 = vector.broadcast %22 : vector<2x1xf32> to vector<2x3xf32>
    %25 = vector.broadcast %23 : vector<1x3xf32> to vector<2x3xf32>
    %26 = arith.mulf %24, %25 : vector<2x3xf32>
    %27 = vector.extract_strided_slice %6 {offsets = [0, 1], sizes = [2, 1], strides = [1, 1]} : vector<2x4xf32> to vector<2x1xf32>
    %28 = vector.extract_strided_slice %20 {offsets = [1, 0], sizes = [1, 3], strides = [1, 1]} : vector<4x3xf32> to vector<1x3xf32>
    %29 = vector.broadcast %27 : vector<2x1xf32> to vector<2x3xf32>
    %30 = vector.broadcast %28 : vector<1x3xf32> to vector<2x3xf32>
    %31 = arith.mulf %29, %30 : vector<2x3xf32>
    %32 = arith.addf %26, %31 : vector<2x3xf32>
    %33 = vector.extract_strided_slice %6 {offsets = [0, 2], sizes = [2, 1], strides = [1, 1]} : vector<2x4xf32> to vector<2x1xf32>
    %34 = vector.extract_strided_slice %20 {offsets = [2, 0], sizes = [1, 3], strides = [1, 1]} : vector<4x3xf32> to vector<1x3xf32>
    %35 = vector.broadcast %33 : vector<2x1xf32> to vector<2x3xf32>
    %36 = vector.broadcast %34 : vector<1x3xf32> to vector<2x3xf32>
    %37 = arith.mulf %35, %36 : vector<2x3xf32>
    %38 = arith.addf %32, %37 : vector<2x3xf32>
    %39 = vector.extract_strided_slice %6 {offsets = [0, 3], sizes = [2, 1], strides = [1, 1]} : vector<2x4xf32> to vector<2x1xf32>
    %40 = vector.extract_strided_slice %20 {offsets = [3, 0], sizes = [1, 3], strides = [1, 1]} : vector<4x3xf32> to vector<1x3xf32>
    %41 = vector.broadcast %39 : vector<2x1xf32> to vector<2x3xf32>
    %42 = vector.broadcast %40 : vector<1x3xf32> to vector<2x3xf32>
    %43 = arith.mulf %41, %42 : vector<2x3xf32>
    %44 = arith.addf %38, %43 : vector<2x3xf32>
    %45 = vector.broadcast %21 : vector<1x3xf32> to vector<2x3xf32>
    %46 = arith.addf %44, %45 : vector<2x3xf32>
    %cst_13 = arith.constant dense<0xFF800000> : vector<2xf32>
    %47 = vector.multi_reduction <maximumf>, %46, %cst_13 [1] : vector<2x3xf32> to vector<2xf32>
    %48 = vector.shape_cast %47 : vector<2xf32> to vector<2x1xf32>
    %49 = vector.broadcast %48 : vector<2x1xf32> to vector<2x3xf32>
    %50 = arith.subf %46, %49 : vector<2x3xf32>
    %51 = math.exp %50 : vector<2x3xf32>
    %cst_14 = arith.constant dense<0.000000e+00> : vector<2xf32>
    %52 = vector.multi_reduction <add>, %51, %cst_14 [1] : vector<2x3xf32> to vector<2xf32>
    %53 = vector.shape_cast %52 : vector<2xf32> to vector<2x1xf32>
    %54 = tpu.reciprocal %53 {approx = true} : vector<2x1xf32> -> vector<2x1xf32>
    %55 = vector.broadcast %54 : vector<2x1xf32> to vector<2x3xf32>
    %56 = arith.mulf %51, %55 : vector<2x3xf32>
    %57 = arith.mulf %19, %56 : vector<2x3xf32>
    %cst_15 = arith.constant dense<0.000000e+00> : vector<2xf32>
    %58 = vector.multi_reduction <add>, %57, %cst_15 [1] : vector<2x3xf32> to vector<2xf32>
    %59 = vector.shape_cast %58 : vector<2xf32> to vector<2x1xf32>
    %cst_16 = arith.constant 0.000000e+00 : f32
    %60 = vector.broadcast %cst_16 : f32 to vector<2x128xf32>
    %c0_17 = arith.constant 0 : index
    %c0_18 = arith.constant 0 : index
    %61 = vector.load %arg7[%c0_17, %c0_18] : memref<2x128xf32, #tpu.memory_space<vmem>>, vector<2x128xf32>
    tpu.vector_store %arg7[%c0_17, %c0_18], %60 {strides = array<i32>} : memref<2x128xf32, #tpu.memory_space<vmem>>, vector<2x128xf32>,
    %c0_19 = arith.constant 0 : index
    %c0_20 = arith.constant 0 : index
    %62 = vector.load %arg7[%c0_19, %c0_20] : memref<2x128xf32, #tpu.memory_space<vmem>>, vector<2x1xf32>
    tpu.vector_store %arg7[%c0_19, %c0_20], %59 {strides = array<i32>} : memref<2x128xf32, #tpu.memory_space<vmem>>, vector<2x1xf32>,
    %c0_21 = arith.constant 0 : index
    %c1 = arith.constant 1 : index
    %63 = vector.load %arg7[%c0_21, %c1] : memref<2x128xf32, #tpu.memory_space<vmem>>, vector<2x3xf32>
    tpu.vector_store %arg7[%c0_21, %c1], %56 {strides = array<i32>} : memref<2x128xf32, #tpu.memory_space<vmem>>, vector<2x3xf32>,
    %c0_22 = arith.constant 0 : index
    %c4 = arith.constant 4 : index
    %64 = vector.load %arg7[%c0_22, %c4] : memref<2x128xf32, #tpu.memory_space<vmem>>, vector<2x3xf32>
    tpu.vector_store %arg7[%c0_22, %c4], %19 {strides = array<i32>} : memref<2x128xf32, #tpu.memory_space<vmem>>, vector<2x3xf32>,
    return
  }
  func.func @transform_0(%arg0: i32) -> (i32, i32) {
    %c0_i32 = arith.constant 0 : i32
    %c0_i32_0 = arith.constant 0 : i32
    %c0_i32_1 = arith.constant 0 : i32
    return %c0_i32, %c0_i32_0 : i32, i32
  }
  func.func @transform_1(%arg0: i32) -> (i32, i32) {
    %c0_i32 = arith.constant 0 : i32
    %c0_i32_0 = arith.constant 0 : i32
    %c0_i32_1 = arith.constant 0 : i32
    return %c0_i32, %c0_i32_0 : i32, i32
  }
  func.func @transform_2(%arg0: i32) -> (i32, i32) {
    %c0_i32 = arith.constant 0 : i32
    %c0_i32_0 = arith.constant 0 : i32
    %c0_i32_1 = arith.constant 0 : i32
    return %c0_i32, %c0_i32_0 : i32, i32
  }
  func.func @transform_3(%arg0: i32) -> (i32, i32) {
    %c0_i32 = arith.constant 0 : i32
    %c0_i32_0 = arith.constant 0 : i32
    %c0_i32_1 = arith.constant 0 : i32
    return %c0_i32, %c0_i32_0 : i32, i32
  }
  func.func @transform_4(%arg0: i32) -> (i32, i32) {
    %c0_i32 = arith.constant 0 : i32
    %c0_i32_0 = arith.constant 0 : i32
    %c0_i32_1 = arith.constant 0 : i32
    return %c0_i32, %c0_i32_0 : i32, i32
  }
  func.func @transform_5(%arg0: i32) -> (i32, i32) {
    %c0_i32 = arith.constant 0 : i32
    %c0_i32_0 = arith.constant 0 : i32
    %c0_i32_1 = arith.constant 0 : i32
    return %c0_i32, %c0_i32_0 : i32, i32
  }
  func.func @transform_6(%arg0: i32) -> (i32, i32) {
    %c0_i32 = arith.constant 0 : i32
    %c0_i32_0 = arith.constant 0 : i32
    %c0_i32_1 = arith.constant 0 : i32
    return %c0_i32, %c0_i32_0 : i32, i32
  }
}

</mosaic_0001>

<llo_original>
// kernel: tpu_custom_call.1
$region0: #{tpu_custom_call.1}
  #allocation0 [shape = 'u32[]', space=smem, size = 0x4, offset = 0x4, fixed_abs, tag = 'smem constant byte address 0x4 - core index']
  #allocation1 [shape = 'u32[144,128]{1,0:T(1,128)}', space=vmem, size = 0x12000, scoped, tag = 'internal scratch']
  %s0 = inlined_call_operand.hbm [shape: f32[2,256], index: 0, kind: input, shape index: {}]
  %s1 = inlined_call_operand.hbm [shape: f32[4,256], index: 1, kind: input, shape index: {}]
  %s2 = inlined_call_operand.vmem [shape: f32[2,2], index: 2, kind: input, shape index: {}]
  %s3 = inlined_call_operand.vmem [shape: f32[2,3], index: 3, kind: input, shape index: {}]
  %s4 = inlined_call_operand.vmem [shape: f32[4,3], index: 4, kind: input, shape index: {}]
  %s5 = inlined_call_operand.vmem [shape: f32[1,3], index: 5, kind: input, shape index: {}]
  %s6 = inlined_call_operand.hbm [shape: f32[2,128], index: 6, kind: output, shape index: {}]
  %s7 = sld [smem:[#allocation0]]
  $region42: #{tpu_custom_call.1} parent=0
    _
  %s9 = ssub.s32 1, %s7
  %s10 = scalar_select 0, %s9, %s7
  $region1: #{tpu_custom_call.1} parent=0
    #allocation2 [shape = 'u8[2048]{0}', space=vmem, size = 0x800, scoped, tag = 'input window, operand 0, single buffered']
    #allocation3 [shape = 's32[1]{0}', space=sflag, size = 0x4, scoped, tag = 'scoped memory for tpu_custom_call.1']
    #allocation4 [shape = 's32[1]{0}', space=sflag, size = 0x4, scoped, tag = 'scoped memory for tpu_custom_call.1']
    #allocation5 [shape = 'u8[4096]{0}', space=vmem, size = 0x1000, scoped, tag = 'input window, operand 1, single buffered']
    #allocation6 [shape = 's32[1]{0}', space=sflag, size = 0x4, scoped, tag = 'scoped memory for tpu_custom_call.1']
    #allocation7 [shape = 'u8[1024]{0}', space=vmem, size = 0x400, scoped, tag = 'output window, operand 0, single buffered']
    %11 = vsyncpa [#allocation3], 0
    %12 = vsyncpa [#allocation6], 0
    %13 = vsyncpa [#allocation4], 0
    // Predicated region
    $region2: #{tpu_custom_call.1} parent=1 // pred_check
      _
    $region3: #{tpu_custom_call.1} parent=1 // pred_check_branch
      %15 = sbr.rel (0) target = $region5
    $region4: #{tpu_custom_call.1} parent=1 // pred_region
      %s17 = ssub.s32 64, 64
      %18 = vsyncadd [#allocation3], %s17
      %s20 = sshll.u32 [#allocation2], 4
      %s21 = int_to_ptr.vmem [resolvable:$true] %s20
      %23 = dma.hbm_to_vmem [thread:$0]  %s0, 64, %s21, [#allocation3]
    $region5: #{tpu_custom_call.1} parent=1 // pred_fallthru
      _
    // Predicated region
    $region6: #{tpu_custom_call.1} parent=1 // pred_check
      _
    $region7: #{tpu_custom_call.1} parent=1 // pred_check_branch
      %25 = sbr.rel (0) target = $region9
    $region8: #{tpu_custom_call.1} parent=1 // pred_region
      %s27 = ssub.s32 128, 128
      %28 = vsyncadd [#allocation6], %s27
      %s30 = sshll.u32 [#allocation5], 4
      %s31 = int_to_ptr.vmem [resolvable:$true] %s30
      %33 = dma.hbm_to_vmem [thread:$0]  %s1, 128, %s31, [#allocation6]
    $region9: #{tpu_custom_call.1} parent=1 // pred_fallthru
      _
    // Predicated region
    $region10: #{tpu_custom_call.1} parent=1 // pred_check
      _
    $region11: #{tpu_custom_call.1} parent=1 // pred_check_branch
      %35 = sbr.rel (0) target = $region13
    $region12: #{tpu_custom_call.1} parent=1 // pred_region
      _
    $region13: #{tpu_custom_call.1} parent=1 // pred_fallthru
      _
    // Predicated region
    $region14: #{tpu_custom_call.1} parent=1 // pred_check
      _
    $region15: #{tpu_custom_call.1} parent=1 // pred_check_branch
      %37 = sbr.rel (0) target = $region17
    $region16: #{tpu_custom_call.1} parent=1 // pred_region
      _
    $region17: #{tpu_custom_call.1} parent=1 // pred_fallthru
      _
    // Predicated region
    $region18: #{tpu_custom_call.1} parent=1 // pred_check
      _
    $region19: #{tpu_custom_call.1} parent=1 // pred_check_branch
      %39 = sbr.rel (0) target = $region21
    $region20: #{tpu_custom_call.1} parent=1 // pred_region
      _
    $region21: #{tpu_custom_call.1} parent=1 // pred_fallthru
      _
    // Predicated region
    $region22: #{tpu_custom_call.1} parent=1 // pred_check
      _
    $region23: #{tpu_custom_call.1} parent=1 // pred_check_branch
      %41 = sbr.rel (0) target = $region25
    $region24: #{tpu_custom_call.1} parent=1 // pred_region
      _
    $region25: #{tpu_custom_call.1} parent=1 // pred_fallthru
      _
    // Predicated region
    $region26: #{tpu_custom_call.1} parent=1 // pred_check
      _
    $region27: #{tpu_custom_call.1} parent=1 // pred_check_branch
      %43 = sbr.rel (0) target = $region29
    $region28: #{tpu_custom_call.1} parent=1 // pred_region
      %44 = dma.done [#allocation3], 64
    $region29: #{tpu_custom_call.1} parent=1 // pred_fallthru
      _
    // Predicated region
    $region30: #{tpu_custom_call.1} parent=1 // pred_check
      _
    $region31: #{tpu_custom_call.1} parent=1 // pred_check_branch
      %46 = sbr.rel (0) target = $region33
    $region32: #{tpu_custom_call.1} parent=1 // pred_region
      %47 = dma.done [#allocation6], 128
    $region33: #{tpu_custom_call.1} parent=1 // pred_fallthru
      _
    %v48 = vld [vmem:[#allocation2] sm:$0xf]
    %v49 = vld [vmem:[#allocation5] sm:$0xff]
    %v50 = vsub.f32 %v49, 0.02
    %v51 = vmax.f32 %v50, 0.0
    %v54 = vunpack.c.l.s4 1983009808
    %v55 = vunpack.c.0.s8 %v54
    %v56 = vlaneseq
    %v57 = vshrl.u32 %v56, 7
    %v58 = vsub.s32 %v55, %v57
    %v59 = vrot.slane %v48, %v58
    %v60 = vcombine.high %v59, %v59
    %v64 = vcombine.high %v51, %v51
    %66 = vmatprep.subr.mxu0 %v64
    %67 = vmatpush1.xpose.msra.mxu0 %v51
    %68 = vmatprep.subr.mxu0 0.0
    %69 = vmatpush1.xpose.msra.mxu0 0.0
    %70 = vmatprep.subr.mxu0 0.0
    %71 = vmatpush1.xpose.msra.mxu0 0.0
    %72 = vmatprep.subr.mxu0 0.0
    %73 = vmatpush1.xpose.msra.mxu0 0.0
    %74 = vmatprep.subr.mxu0 0.0
    %75 = vmatpush1.xpose.msra.mxu0 0.0
    %76 = vmatprep.subr.mxu0 0.0
    %77 = vmatpush1.xpose.msra.mxu0 0.0
    %78 = vmatprep.subr.mxu0 0.0
    %79 = vmatpush1.xpose.msra.mxu0 0.0
    %80 = vmatprep.subr.mxu0 0.0
    %81 = vmatpush1.xpose.msra.mxu0 0.0
    %82 = vmatprep.subr.mxu0 0.0
    %83 = vmatpush1.xpose.msra.mxu0 0.0
    %84 = vmatprep.subr.mxu0 0.0
    %85 = vmatpush1.xpose.msra.mxu0 0.0
    %86 = vmatprep.subr.mxu0 0.0
    %87 = vmatpush1.xpose.msra.mxu0 0.0
    %88 = vmatprep.subr.mxu0 0.0
    %89 = vmatpush1.xpose.msra.mxu0 0.0
    %90 = vmatprep.subr.mxu0 0.0
    %91 = vmatpush1.xpose.msra.mxu0 0.0
    %92 = vmatprep.subr.mxu0 0.0
    %93 = vmatpush1.xpose.msra.mxu0 0.0
    %94 = vmatprep.subr.mxu0 0.0
    %95 = vmatpush1.xpose.msra.mxu0 0.0
    %96 = vmatprep.subr.mxu0 0.0
    %97 = vmatpush1.xpose.msra.mxu0 0.0
    %98 = vmatprep.subr.mxu0 0.0
    %99 = vmatpush1.xpose.msra.mxu0 0.0
    %100 = vmatprep.subr.mxu0 0.0
    %101 = vmatpush1.xpose.msra.mxu0 0.0
    %102 = vmatprep.subr.mxu0 0.0
    %103 = vmatpush1.xpose.msra.mxu0 0.0
    %104 = vmatprep.subr.mxu0 0.0
    %105 = vmatpush1.xpose.msra.mxu0 0.0
    %106 = vmatprep.subr.mxu0 0.0
    %107 = vmatpush1.xpose.msra.mxu0 0.0
    %108 = vmatprep.subr.mxu0 0.0
    %109 = vmatpush1.xpose.msra.mxu0 0.0
    %110 = vmatprep.subr.mxu0 0.0
    %111 = vmatpush1.xpose.msra.mxu0 0.0
    %112 = vmatprep.subr.mxu0 0.0
    %113 = vmatpush1.xpose.msra.mxu0 0.0
    %114 = vmatprep.subr.mxu0 0.0
    %115 = vmatpush1.xpose.msra.mxu0 0.0
    %116 = vmatprep.subr.mxu0 0.0
    %117 = vmatpush1.xpose.msra.mxu0 0.0
    %118 = vmatprep.subr.mxu0 0.0
    %119 = vmatpush1.xpose.msra.mxu0 0.0
    %120 = vmatprep.subr.mxu0 0.0
    %121 = vmatpush1.xpose.msra.mxu0 0.0
    %122 = vmatprep.subr.mxu0 0.0
    %123 = vmatpush1.xpose.msra.mxu0 0.0
    %124 = vmatprep.subr.mxu0 0.0
    %125 = vmatpush1.xpose.msra.mxu0 0.0
    %126 = vmatprep.subr.mxu0 0.0
    %127 = vmatpush1.xpose.msra.mxu0 0.0
    %128 = vmatprep.subr.mxu0 0.0
    %129 = vmatpush1.xpose.msra.mxu0 0.0
    %130 = vmatprep.mubr.f32.mxu0 %v60
    %131 = vmatmul.mubr.f32.gmra.mrb[0].mxu0 %v59
    %v132 = vpop.f32.mrb[0].mxu0
    %v133 = vadd.f32 0.0, %v132
    %v134 = vpop.f32.mrb[0].mxu0
    %135 = vdwg.mxu0
    %v136 = vld [vmem:[%s2] sm:$0x3]
    %v137 = vld [vmem:[%s3] sm:$0x3]
    %139 = vset.pattern.permute.xlu0 0
    %140 = vperm.xlu0 %139, %v136
    %v141 = vpop.permute.xlu0 %140
    %v143 = vlaneseq
    %v144 = vshrl.u32 %v143, 7
    %v145 = vsub.s32 0, %v144
    %v146 = vrot.slane %v137, %v145
    %v147 = vmul.f32 %v141, %v146
    %148 = vset.pattern.permute.xlu0 1
    %149 = vperm.xlu0 %148, %v136
    %v150 = vpop.permute.xlu0 %149
    %v152 = vlaneseq
    %v153 = vshrl.u32 %v152, 7
    %v154 = vsub.s32 1, %v153
    %v155 = vrot.slane %v137, %v154
    %v156 = vmul.f32 %v150, %v155
    %v157 = vadd.f32 %v147, %v156
    %v158 = vld [vmem:[%s4] sm:$0xf]
    %v159 = vld [vmem:[%s5] sm:$0x1]
    %161 = vset.pattern.permute.xlu0 0
    %162 = vperm.xlu0 %161, %v133
    %v163 = vpop.permute.xlu0 %162
    %v165 = vlaneseq
    %v166 = vshrl.u32 %v165, 7
    %v167 = vsub.s32 0, %v166
    %v168 = vrot.slane %v158, %v167
    %v169 = vmul.f32 %v163, %v168
    %170 = vset.pattern.permute.xlu0 1
    %171 = vperm.xlu0 %170, %v133
    %v172 = vpop.permute.xlu0 %171
    %v174 = vlaneseq
    %v175 = vshrl.u32 %v174, 7
    %v176 = vsub.s32 1, %v175
    %v177 = vrot.slane %v158, %v176
    %v178 = vmul.f32 %v172, %v177
    %v179 = vadd.f32 %v169, %v178
    %180 = vset.pattern.permute.xlu0 2
    %181 = vperm.xlu0 %180, %v133
    %v182 = vpop.permute.xlu0 %181
    %v184 = vlaneseq
    %v185 = vshrl.u32 %v184, 7
    %v186 = vsub.s32 2, %v185
    %v187 = vrot.slane %v158, %v186
    %v188 = vmul.f32 %v182, %v187
    %v189 = vadd.f32 %v179, %v188
    %190 = vset.pattern.permute.xlu0 3
    %191 = vperm.xlu0 %190, %v133
    %v192 = vpop.permute.xlu0 %191
    %v194 = vlaneseq
    %v195 = vshrl.u32 %v194, 7
    %v196 = vsub.s32 3, %v195
    %v197 = vrot.slane %v158, %v196
    %v198 = vmul.f32 %v192, %v197
    %v199 = vadd.f32 %v189, %v198
    %v201 = vlaneseq
    %v202 = vshrl.u32 %v201, 7
    %v203 = vsub.s32 0, %v202
    %v204 = vrot.slane %v159, %v203
    %v206 = vadd.f32 %v199, %v204
    %vm207 = vcmask 17408
    %v208 = vsel %vm207, %v206, -inf
    %209 = vmax.xlane.f32.xlu0 %v208
    %v210 = vpop.xlane.xlu0 %209
    %v211 = vsub.f32 %v206, %v210
    %v212 = vmul.f32 %v211, 1.442695
    %v213 = vpow.pop %v212
    %v214 = vsel %vm207, %v213, 0.0
    %215 = vadd.xlane.f32.xlu0 %v214
    %v216 = vpop.xlane.xlu0 %215
    %v217 = vrcp.pop %v216
    %v218 = vmul.f32 %v213, %v217
    %v219 = vmul.f32 %v157, %v218
    %v220 = vsel %vm207, %v219, 0.0
    %221 = vadd.xlane.f32.xlu0 %v220
    %v222 = vpop.xlane.xlu0 %221
    %223 = vst [vmem:[#allocation7] sm:$0x3] 0.0
    %vm224 = vcmask 1024
    %225 = vst.msk [vmem:[#allocation7] sm:$0x3] %vm224, %v222
    %227 = vrot.lane.b32.xlu0 %v218, 1
    %v228 = vpop.permute.xlu0 %227
    %vm230 = vcmask 25608
    %231 = vst.msk [vmem:[#allocation7] sm:$0x3] %vm230, %v228
    %233 = vrot.lane.b32.xlu0 %v157, 4
    %v234 = vpop.permute.xlu0 %233
    %vm236 = vcmask 50208
    %237 = vst.msk [vmem:[#allocation7] sm:$0x3] %vm236, %v234
    // Predicated region
    $region34: #{tpu_custom_call.1} parent=1 // pred_check
      _
    $region35: #{tpu_custom_call.1} parent=1 // pred_check_branch
      %239 = sbr.rel (0) target = $region37
    $region36: #{tpu_custom_call.1} parent=1 // pred_region
      %s241 = ssub.s32 32, 32
      %242 = vsyncadd [#allocation4], %s241
      %s244 = sshll.u32 [#allocation7], 4
      %s245 = int_to_ptr.vmem [resolvable:$true] %s244
      %247 = dma.vmem_to_hbm [thread:$0]  %s245, 32, %s6, [#allocation4]
    $region37: #{tpu_custom_call.1} parent=1 // pred_fallthru
      _
    // Predicated region
    $region38: #{tpu_custom_call.1} parent=1 // pred_check
      _
    $region39: #{tpu_custom_call.1} parent=1 // pred_check_branch
      %249 = sbr.rel (0) target = $region41
    $region40: #{tpu_custom_call.1} parent=1 // pred_region
      %250 = dma.done [#allocation4], 32
    $region41: #{tpu_custom_call.1} parent=1 // pred_fallthru
      _
    %251 = vsyncpa [#allocation3], 1
    %252 = vsyncpa [#allocation6], 1
    %253 = vsyncpa [#allocation4], 1

</llo_original>
